<compile_context>
chip_gen: v6e
topology: v6e:2x2x1
jax: 0.10.0
libtpu: 0.0.40
codegen_flags: <defaults>
</compile_context>

<pallas_src>
import functools

import jax
import jax.numpy as jnp
from jax.experimental import pallas as pl
from jax.experimental.pallas import tpu as pltpu

SUBLANES = 8  # TPU sublane granularity (f32)


def _round_up(x, m):
    return ((x + m - 1) // m) * m


def cm_model_kernel(x_ref, w1_ref, b1_ref, w2_ref, b2_ref, out_ref, *,
                    action_num):
    # x:  [TB, H]         w1: [H, 64]       b1: [1, 64]
    # w2: [64, a_cols]    b2: [1, a_cols]   out: [TB, a_cols]
    x = x_ref[...]

    # Dense layer + ReLU (MXU matmul, f32 accumulation; bias + relu on VPU).
    h1 = jnp.dot(x, w1_ref[...], preferred_element_type=jnp.float32)
    h1 = jnp.maximum(h1 + b1_ref[...], 0.0)

    # Classifier (padded columns of w2/b2 are zero -> padded scores are 0).
    score = jnp.dot(h1, w2_ref[...], preferred_element_type=jnp.float32)
    score = score + b2_ref[...]                                   # [TB, a_cols]

    tb, a_cols = score.shape
    col = jax.lax.broadcasted_iota(jnp.int32, (tb, a_cols), 1)
    valid = col < action_num

    # argmax over the real action columns only (first occurrence on ties,
    # matching torch.argmax): mask padding to -inf, take max, then min index.
    # NOTE: rows containing NaN scores would diverge from torch.argmax
    # (only relevant if inputs can produce NaN).
    s_masked = jnp.where(valid, score, -jnp.inf)
    max_val = jnp.max(s_masked, axis=1, keepdims=True)            # [TB, 1]
    idx_or_big = jnp.where(s_masked == max_val, col, jnp.int32(a_cols))
    is_stop = jnp.min(idx_or_big, axis=1, keepdims=True)          # [TB, 1]
    # isStop rides in lane `action_num` as f32; exact for indices < 2^24.
    is_stop_f = is_stop.astype(jnp.float32)

    out = jnp.where(col == action_num, is_stop_f, score)
    out_ref[...] = out.astype(out_ref.dtype)


def cm_model_v1_forward(params, rdm_state, *, block_batch=4096):
    """rdm_state: [B, H] f32.  Returns (stopScore [B, A] f32, isStop [B] i32)."""
    w1 = params["w1"]
    b1_row = params["b1_row"]
    w2_pad = params["w2_pad"]
    b2_pad = params["b2_pad"]
    A = params["action_num"]

    B, H = rdm_state.shape
    a_cols = w2_pad.shape[1]              # round_up(A + 1, 8)

    # Balanced batch tiling: fewest (large) steps that fit block_batch, then
    # even them out so a batch just above a tile multiple doesn't double the
    # padded work.  Force >=2 steps when the batch allows so v7x's two
    # TensorCores both get a share of the "parallel" grid axis.
    b8 = _round_up(B, SUBLANES)
    nsteps = pl.cdiv(b8, block_batch)
    if b8 >= 2 * SUBLANES:
        nsteps = max(nsteps, 2)
    tb = _round_up(pl.cdiv(b8, nsteps), SUBLANES)
    grid = (pl.cdiv(B, tb),)

    # VMEM per step at tb=4096: x tile lane-pads to [tb,128] (~2 MiB) and the
    # out tile likewise (~2 MiB); x2 double-buffering ~8-9 MiB total -- well
    # under the 32 MiB scoped default on every generation (incl. v7x).
    kernel = functools.partial(cm_model_kernel, action_num=A)

    slab = pl.pallas_call(
        kernel,
        out_shape=jax.ShapeDtypeStruct((B, a_cols), jnp.float32),
        grid=grid,
        in_specs=[
            # activations: tiled over the batch grid axis (ragged last block
            # handled by Pallas; garbage rows are masked off at the store)
            pl.BlockSpec((tb, H), lambda i: (i, 0)),
            # weights / biases: constant block index -> resident across steps
            pl.BlockSpec((H, 64), lambda i: (0, 0)),
            pl.BlockSpec((1, 64), lambda i: (0, 0)),
            pl.BlockSpec((64, a_cols), lambda i: (0, 0)),
            pl.BlockSpec((1, a_cols), lambda i: (0, 0)),
        ],
        out_specs=pl.BlockSpec((tb, a_cols), lambda i: (i, 0)),
        compiler_params=pltpu.CompilerParams(
            dimension_semantics=("parallel",)),
    )(rdm_state, w1, b1_row, w2_pad, b2_pad)

    # Cheap slices of the narrow slab (a_cols lanes, not 128).
    score = slab[:, :A]
    is_stop = slab[:, A].astype(jnp.int32)
    return score, is_stop


def init_params(key, hidden_dim, action_num):
    """Deterministic init mimicking nn.Linear default (uniform +-1/sqrt(fan_in)).

    Classifier padding (isStop lane + round-up to 8 lanes) is done ONCE here
    instead of on every forward call.
    """
    k1, k2, k3, k4 = jax.random.split(key, 4)
    bound1 = 1.0 / jnp.sqrt(hidden_dim)
    bound2 = 1.0 / jnp.sqrt(64.0)
    # stored as [in, out] (transposed vs. PyTorch's [out, in])
    w1 = jax.random.uniform(k1, (hidden_dim, 64), jnp.float32, -bound1, bound1)
    b1 = jax.random.uniform(k2, (64,), jnp.float32, -bound1, bound1)
    w2 = jax.random.uniform(k3, (64, action_num), jnp.float32, -bound2, bound2)
    b2 = jax.random.uniform(k4, (action_num,), jnp.float32, -bound2, bound2)

    a_cols = _round_up(action_num + 1, SUBLANES)   # A scores + 1 isStop lane
    w2_pad = jnp.zeros((64, a_cols), jnp.float32).at[:, :action_num].set(w2)
    b2_pad = jnp.zeros((1, a_cols), jnp.float32).at[0, :action_num].set(b2)

    return dict(w1=w1, b1_row=b1.reshape(1, -1), w2=w2, b2=b2,
                w2_pad=w2_pad, b2_pad=b2_pad, action_num=action_num)


def _reference(rdm_state, params):
    hi = jax.lax.Precision.HIGHEST
    h1 = jnp.maximum(
        jnp.dot(rdm_state, params["w1"], precision=hi) + params["b1_row"][0], 0.0)
    score = jnp.dot(h1, params["w2"], precision=hi) + params["b2"]
    return score, jnp.argmax(score, axis=1).astype(jnp.int32)


if __name__ == "__main__":
    hidden_dim = 32
    action_num = 4

    key = jax.random.PRNGKey(0)
    k_x1, k_p, k_x2, k_x3 = jax.random.split(key, 4)
    params = init_params(k_p, hidden_dim, action_num)

    # Case 1: batch equal to the sublane granularity (single full block).
    batch = 8
    x1 = jax.random.normal(k_x1, (batch, hidden_dim), jnp.float32)
    score1, stop1 = cm_model_v1_forward(params, x1)
    jax.block_until_ready((score1, stop1))
    score1_ref, stop1_ref = _reference(x1, params)
    assert score1.shape == (batch, action_num)
    assert stop1.shape == (batch,)
    assert jnp.allclose(score1, score1_ref, atol=1e-5), "score mismatch (case 1)"
    assert jnp.array_equal(stop1, stop1_ref), "argmax mismatch (case 1)"

    # Case 2: ragged batch (exercises Pallas partial-block handling, no pad copy).
    batch2 = 5
    x2 = jax.random.normal(k_x2, (batch2, hidden_dim), jnp.float32)
    score2, stop2 = cm_model_v1_forward(params, x2)
    jax.block_until_ready((score2, stop2))
    score2_ref, stop2_ref = _reference(x2, params)
    assert jnp.allclose(score2, score2_ref, atol=1e-5), "score mismatch (case 2)"
    assert jnp.array_equal(stop2, stop2_ref), "argmax mismatch (case 2)"

    # Case 3: multi-step grid with a ragged final block (balanced tiles,
    # >=2 steps for the v7x two-TensorCore path).
    batch3 = 24
    x3 = jax.random.normal(k_x3, (batch3, hidden_dim), jnp.float32)
    score3, stop3 = cm_model_v1_forward(params, x3)
    jax.block_until_ready((score3, stop3))
    score3_ref, stop3_ref = _reference(x3, params)
    assert jnp.allclose(score3, score3_ref, atol=1e-5), "score mismatch (case 3)"
    assert jnp.array_equal(stop3, stop3_ref), "argmax mismatch (case 3)"

    print("KERNEL_OK")
</pallas_src>

<mosaic_0001>
module attributes {stable_mosaic.version = 11 : i64} {
  func.func @cm_model_kernel(%arg0: i32, %arg1: memref<8x32xf32, #tpu.memory_space<vmem>>, %arg2: memref<32x64xf32, #tpu.memory_space<vmem>>, %arg3: memref<1x64xf32, #tpu.memory_space<vmem>>, %arg4: memref<64x8xf32, #tpu.memory_space<vmem>>, %arg5: memref<1x8xf32, #tpu.memory_space<vmem>>, %arg6: memref<8x8xf32, #tpu.memory_space<vmem>>) attributes {dimension_semantics = [#tpu.dimension_semantics<parallel>], iteration_bounds = array<i64: 1>, scalar_prefetch = 0 : i64, scratch_operands = 0 : i64, tpu.core_type = #tpu.core_type<tc>, window_params = [{transform_indices = @transform_0, window_bounds = array<i64: 8, 32>}, {pipeline_mode = #tpu.pipeline_mode<synchronous>, transform_indices = @transform_1, window_bounds = array<i64: 32, 64>}, {pipeline_mode = #tpu.pipeline_mode<synchronous>, transform_indices = @transform_2, window_bounds = array<i64: 1, 64>}, {pipeline_mode = #tpu.pipeline_mode<synchronous>, transform_indices = @transform_3, window_bounds = array<i64: 64, 8>}, {pipeline_mode = #tpu.pipeline_mode<synchronous>, transform_indices = @transform_4, window_bounds = array<i64: 1, 8>}, {transform_indices = @transform_5, window_bounds = array<i64: 8, 8>}]} {
    %c0 = arith.constant 0 : index
    %c0_0 = arith.constant 0 : index
    %0 = vector.load %arg1[%c0, %c0_0] : memref<8x32xf32, #tpu.memory_space<vmem>>, vector<8x32xf32>
    %c0_1 = arith.constant 0 : index
    %c0_2 = arith.constant 0 : index
    %1 = vector.load %arg2[%c0_1, %c0_2] : memref<32x64xf32, #tpu.memory_space<vmem>>, vector<32x64xf32>
    %cst = arith.constant dense<0.000000e+00> : vector<8x64xf32>
    %2 = tpu.matmul %0, %1, %cst {dimension_numbers = #tpu.dot_dimension_numbers<[1], [0], [0], [1], [0, 0, 1, 1], [], []>} : vector<8x32xf32>, vector<32x64xf32>, vector<8x64xf32> -> vector<8x64xf32>
    %c0_3 = arith.constant 0 : index
    %c0_4 = arith.constant 0 : index
    %3 = vector.load %arg3[%c0_3, %c0_4] : memref<1x64xf32, #tpu.memory_space<vmem>>, vector<1x64xf32>
    %4 = vector.broadcast %3 : vector<1x64xf32> to vector<8x64xf32>
    %5 = arith.addf %2, %4 : vector<8x64xf32>
    %cst_5 = arith.constant 0.000000e+00 : f32
    %6 = vector.broadcast %cst_5 : f32 to vector<8x64xf32>
    %7 = arith.maximumf %5, %6 : vector<8x64xf32>
    %c0_6 = arith.constant 0 : index
    %c0_7 = arith.constant 0 : index
    %8 = vector.load %arg4[%c0_6, %c0_7] : memref<64x8xf32, #tpu.memory_space<vmem>>, vector<64x8xf32>
    %cst_8 = arith.constant dense<0.000000e+00> : vector<8x8xf32>
    %9 = tpu.matmul %7, %8, %cst_8 {dimension_numbers = #tpu.dot_dimension_numbers<[1], [0], [0], [1], [0, 0, 1, 1], [], []>} : vector<8x64xf32>, vector<64x8xf32>, vector<8x8xf32> -> vector<8x8xf32>
    %c0_9 = arith.constant 0 : index
    %c0_10 = arith.constant 0 : index
    %10 = vector.load %arg5[%c0_9, %c0_10] : memref<1x8xf32, #tpu.memory_space<vmem>>, vector<1x8xf32>
    %11 = vector.broadcast %10 : vector<1x8xf32> to vector<8x8xf32>
    %12 = arith.addf %9, %11 : vector<8x8xf32>
    %13 = tpu.iota {dimensions = array<i32: 1>} : vector<8x8xi32>
    %c4_i32 = arith.constant 4 : i32
    %14 = vector.broadcast %c4_i32 : i32 to vector<8x8xi32>
    %15 = arith.cmpi slt, %13, %14 : vector<8x8xi32>
    %cst_11 = arith.constant 0xFF800000 : f32
    %16 = vector.broadcast %cst_11 : f32 to vector<8x8xf32>
    %17 = arith.select %15, %12, %16 : vector<8x8xi1>, vector<8x8xf32>
    %cst_12 = arith.constant dense<0xFF800000> : vector<8xf32>
    %18 = vector.multi_reduction <maximumf>, %17, %cst_12 [1] : vector<8x8xf32> to vector<8xf32>
    %19 = vector.shape_cast %18 : vector<8xf32> to vector<8x1xf32>
    %20 = vector.broadcast %19 : vector<8x1xf32> to vector<8x8xf32>
    %21 = arith.cmpf oeq, %17, %20 : vector<8x8xf32>
    %c8_i32 = arith.constant 8 : i32
    %22 = vector.broadcast %c8_i32 : i32 to vector<8x8xi32>
    %23 = arith.select %21, %13, %22 : vector<8x8xi1>, vector<8x8xi32>
    %cst_13 = arith.constant dense<2147483647> : vector<8xi32>
    %24 = vector.multi_reduction <minsi>, %23, %cst_13 [1] : vector<8x8xi32> to vector<8xi32>
    %25 = vector.shape_cast %24 : vector<8xi32> to vector<8x1xi32>
    %26 = arith.sitofp %25 : vector<8x1xi32> to vector<8x1xf32>
    %c4_i32_14 = arith.constant 4 : i32
    %27 = vector.broadcast %c4_i32_14 : i32 to vector<8x8xi32>
    %28 = arith.cmpi eq, %13, %27 : vector<8x8xi32>
    %29 = vector.shape_cast %26 : vector<8x1xf32> to vector<8x1xf32>
    %30 = vector.broadcast %29 : vector<8x1xf32> to vector<8x8xf32>
    %31 = arith.select %28, %30, %12 : vector<8x8xi1>, vector<8x8xf32>
    %c0_15 = arith.constant 0 : index
    %c0_16 = arith.constant 0 : index
    %32 = vector.load %arg6[%c0_15, %c0_16] : memref<8x8xf32, #tpu.memory_space<vmem>>, vector<8x8xf32>
    tpu.vector_store %arg6[%c0_15, %c0_16], %31 {strides = array<i32>} : memref<8x8xf32, #tpu.memory_space<vmem>>, vector<8x8xf32>,
    return
  }
  func.func @transform_0(%arg0: i32) -> (i32, i32) {
    %c0_i32 = arith.constant 0 : i32
    %c0_i32_0 = arith.constant 0 : i32
    return %arg0, %c0_i32 : i32, i32
  }
  func.func @transform_1(%arg0: i32) -> (i32, i32) {
    %c0_i32 = arith.constant 0 : i32
    %c0_i32_0 = arith.constant 0 : i32
    %c0_i32_1 = arith.constant 0 : i32
    return %c0_i32, %c0_i32_0 : i32, i32
  }
  func.func @transform_2(%arg0: i32) -> (i32, i32) {
    %c0_i32 = arith.constant 0 : i32
    %c0_i32_0 = arith.constant 0 : i32
    %c0_i32_1 = arith.constant 0 : i32
    return %c0_i32, %c0_i32_0 : i32, i32
  }
  func.func @transform_3(%arg0: i32) -> (i32, i32) {
    %c0_i32 = arith.constant 0 : i32
    %c0_i32_0 = arith.constant 0 : i32
    %c0_i32_1 = arith.constant 0 : i32
    return %c0_i32, %c0_i32_0 : i32, i32
  }
  func.func @transform_4(%arg0: i32) -> (i32, i32) {
    %c0_i32 = arith.constant 0 : i32
    %c0_i32_0 = arith.constant 0 : i32
    %c0_i32_1 = arith.constant 0 : i32
    return %c0_i32, %c0_i32_0 : i32, i32
  }
  func.func @transform_5(%arg0: i32) -> (i32, i32) {
    %c0_i32 = arith.constant 0 : i32
    %c0_i32_0 = arith.constant 0 : i32
    return %arg0, %c0_i32 : i32, i32
  }
}

</mosaic_0001>

<llo_original>
// kernel: tpu_custom_call.1
$region0: #{tpu_custom_call.1}
  #allocation0 [shape = 'u32[]', space=smem, size = 0x4, offset = 0x4, fixed_abs, tag = 'smem constant byte address 0x4 - core index']
  #allocation1 [shape = 'u32[144,128]{1,0:T(1,128)}', space=vmem, size = 0x12000, scoped, tag = 'internal scratch']
  %s0 = inlined_call_operand.vmem [shape: f32[8,32], index: 0, kind: input, shape index: {}]
  %s1 = inlined_call_operand.vmem [shape: f32[32,64], index: 1, kind: input, shape index: {}]
  %s2 = inlined_call_operand.vmem [shape: f32[1,64], index: 2, kind: input, shape index: {}]
  %s3 = inlined_call_operand.vmem [shape: f32[64,8], index: 3, kind: input, shape index: {}]
  %s4 = inlined_call_operand.vmem [shape: f32[1,8], index: 4, kind: input, shape index: {}]
  %s5 = inlined_call_operand.hbm [shape: f32[8,8], index: 5, kind: output, shape index: {}]
  %s6 = sld [smem:[#allocation0]]
  $region30: #{tpu_custom_call.1} parent=0
    _
  %s8 = ssub.s32 1, %s6
  %s9 = scalar_select 0, %s8, %s6
  $region1: #{tpu_custom_call.1} parent=0
    #allocation2 [shape = 'u8[4096]{0}', space=vmem, size = 0x1000, scoped, tag = 'output window, operand 0, single buffered']
    #allocation3 [shape = 's32[1]{0}', space=sflag, size = 0x4, scoped, tag = 'scoped memory for tpu_custom_call.1']
    %10 = vsyncpa [#allocation3], 0
    // Predicated region
    $region2: #{tpu_custom_call.1} parent=1 // pred_check
      _
    $region3: #{tpu_custom_call.1} parent=1 // pred_check_branch
      %12 = sbr.rel (0) target = $region5
    $region4: #{tpu_custom_call.1} parent=1 // pred_region
      _
    $region5: #{tpu_custom_call.1} parent=1 // pred_fallthru
      _
    // Predicated region
    $region6: #{tpu_custom_call.1} parent=1 // pred_check
      _
    $region7: #{tpu_custom_call.1} parent=1 // pred_check_branch
      %14 = sbr.rel (0) target = $region9
    $region8: #{tpu_custom_call.1} parent=1 // pred_region
      _
    $region9: #{tpu_custom_call.1} parent=1 // pred_fallthru
      _
    // Predicated region
    $region10: #{tpu_custom_call.1} parent=1 // pred_check
      _
    $region11: #{tpu_custom_call.1} parent=1 // pred_check_branch
      %16 = sbr.rel (0) target = $region13
    $region12: #{tpu_custom_call.1} parent=1 // pred_region
      _
    $region13: #{tpu_custom_call.1} parent=1 // pred_fallthru
      _
    // Predicated region
    $region14: #{tpu_custom_call.1} parent=1 // pred_check
      _
    $region15: #{tpu_custom_call.1} parent=1 // pred_check_branch
      %18 = sbr.rel (0) target = $region17
    $region16: #{tpu_custom_call.1} parent=1 // pred_region
      _
    $region17: #{tpu_custom_call.1} parent=1 // pred_fallthru
      _
    // Predicated region
    $region18: #{tpu_custom_call.1} parent=1 // pred_check
      _
    $region19: #{tpu_custom_call.1} parent=1 // pred_check_branch
      %20 = sbr.rel (0) target = $region21
    $region20: #{tpu_custom_call.1} parent=1 // pred_region
      _
    $region21: #{tpu_custom_call.1} parent=1 // pred_fallthru
      _
    %v21 = vld [vmem:[%s0] sm:$0xff]
    %v22 = vld [vmem:[%s1] sm:$0xff]
    %v23 = vld [vmem:[%s1 + $0x8] sm:$0xff]
    %v24 = vld [vmem:[%s1 + $0x10] sm:$0xff]
    %v25 = vld [vmem:[%s1 + $0x18] sm:$0xff]
    %v26 = vld [vmem:[%s2] sm:$0x1]
    %v28 = vlaneseq
    %v29 = vshrl.u32 %v28, 7
    %v30 = vsub.s32 0, %v29
    %v31 = vrot.slane %v26, %v30
    %vm33 = vcmask 261120
    %v35 = vsel %vm33, %v21, 0
    %37 = vmatprep.subr.mxu0 0.0
    %38 = vmatpush1.msra.mxu0 0.0
    %39 = vmatprep.subr.mxu0 0.0
    %40 = vmatpush1.msra.mxu0 0.0
    %41 = vmatprep.subr.mxu0 0.0
    %42 = vmatpush1.msra.mxu0 0.0
    %43 = vmatprep.subr.mxu0 0.0
    %44 = vmatpush1.msra.mxu0 0.0
    %45 = vmatprep.subr.mxu0 0.0
    %46 = vmatpush1.msra.mxu0 0.0
    %47 = vmatprep.subr.mxu0 0.0
    %48 = vmatpush1.msra.mxu0 0.0
    %49 = vmatprep.subr.mxu0 0.0
    %50 = vmatpush1.msra.mxu0 0.0
    %51 = vmatprep.subr.mxu0 0.0
    %52 = vmatpush1.msra.mxu0 0.0
    %53 = vmatprep.subr.mxu0 0.0
    %54 = vmatpush1.msra.mxu0 0.0
    %55 = vmatprep.subr.mxu0 0.0
    %56 = vmatpush1.msra.mxu0 0.0
    %57 = vmatprep.subr.mxu0 0.0
    %58 = vmatpush1.msra.mxu0 0.0
    %59 = vmatprep.subr.mxu0 0.0
    %60 = vmatpush1.msra.mxu0 0.0
    %61 = vmatprep.subr.mxu0 0.0
    %62 = vmatpush1.msra.mxu0 %v25
    %63 = vmatprep.subr.mxu0 0.0
    %64 = vmatpush1.msra.mxu0 %v24
    %65 = vmatprep.subr.mxu0 0.0
    %66 = vmatpush1.msra.mxu0 %v23
    %67 = vmatprep.subr.mxu0 0.0
    %68 = vmatpush1.msra.mxu0 %v22
    %69 = vmatprep.subr.mxu0 0.0
    %70 = vmatpush2.msra.mxu0 0.0
    %71 = vmatprep.subr.mxu0 0.0
    %72 = vmatpush2.msra.mxu0 0.0
    %73 = vmatprep.subr.mxu0 0.0
    %74 = vmatpush2.msra.mxu0 0.0
    %75 = vmatprep.subr.mxu0 0.0
    %76 = vmatpush2.msra.mxu0 0.0
    %77 = vmatprep.subr.mxu0 0.0
    %78 = vmatpush2.msra.mxu0 0.0
    %79 = vmatprep.subr.mxu0 0.0
    %80 = vmatpush2.msra.mxu0 0.0
    %81 = vmatprep.subr.mxu0 0.0
    %82 = vmatpush2.msra.mxu0 0.0
    %83 = vmatprep.subr.mxu0 0.0
    %84 = vmatpush2.msra.mxu0 0.0
    %85 = vmatprep.subr.mxu0 0.0
    %86 = vmatpush2.msra.mxu0 0.0
    %87 = vmatprep.subr.mxu0 0.0
    %88 = vmatpush2.msra.mxu0 0.0
    %89 = vmatprep.subr.mxu0 0.0
    %90 = vmatpush2.msra.mxu0 0.0
    %91 = vmatprep.subr.mxu0 0.0
    %92 = vmatpush2.msra.mxu0 0.0
    %93 = vmatprep.subr.mxu0 0.0
    %94 = vmatpush2.msra.mxu0 0.0
    %95 = vmatprep.subr.mxu0 0.0
    %96 = vmatpush2.msra.mxu0 0.0
    %97 = vmatprep.subr.mxu0 0.0
    %98 = vmatpush2.msra.mxu0 0.0
    %99 = vmatprep.subr.mxu0 0.0
    %100 = vmatpush2.msra.mxu0 0.0
    %101 = vmatprep.mubr.f32.mxu0 0.0
    %102 = vmatmul.mubr.f32.gmra.mxu0 %v35
    %v103 = vpop.f32.mrf.mxu0
    %v104 = vadd.f32 %v31, %v103
    %v105 = vpop.f32.mrf.mxu0
    %106 = vdwg.mxu0
    %v107 = vmax.f32 %v104, 0.0
    %v108 = vld [vmem:[%s3] sm:$0xff]
    %v109 = vld [vmem:[%s3 + $0x8] sm:$0xff]
    %v110 = vld [vmem:[%s3 + $0x10] sm:$0xff]
    %v111 = vld [vmem:[%s3 + $0x18] sm:$0xff]
    %v112 = vld [vmem:[%s3 + $0x20] sm:$0xff]
    %v113 = vld [vmem:[%s3 + $0x28] sm:$0xff]
    %v114 = vld [vmem:[%s3 + $0x30] sm:$0xff]
    %v115 = vld [vmem:[%s3 + $0x38] sm:$0xff]
    %v116 = vld [vmem:[%s4] sm:$0x1]
    %v118 = vlaneseq
    %v119 = vshrl.u32 %v118, 7
    %v120 = vsub.s32 0, %v119
    %v121 = vrot.slane %v116, %v120
    %vm123 = vcmask 523264
    %v125 = vsel %vm123, %v107, 0
    %127 = vmatprep.subr.mxu0 0.0
    %128 = vmatpush1.msra.mxu0 0.0
    %129 = vmatprep.subr.mxu0 0.0
    %130 = vmatpush1.msra.mxu0 0.0
    %131 = vmatprep.subr.mxu0 0.0
    %132 = vmatpush1.msra.mxu0 0.0
    %133 = vmatprep.subr.mxu0 0.0
    %134 = vmatpush1.msra.mxu0 0.0
    %135 = vmatprep.subr.mxu0 0.0
    %136 = vmatpush1.msra.mxu0 0.0
    %137 = vmatprep.subr.mxu0 0.0
    %138 = vmatpush1.msra.mxu0 0.0
    %139 = vmatprep.subr.mxu0 0.0
    %140 = vmatpush1.msra.mxu0 0.0
    %141 = vmatprep.subr.mxu0 0.0
    %142 = vmatpush1.msra.mxu0 0.0
    %143 = vmatprep.subr.mxu0 0.0
    %144 = vmatpush1.msra.mxu0 %v115
    %145 = vmatprep.subr.mxu0 0.0
    %146 = vmatpush1.msra.mxu0 %v114
    %147 = vmatprep.subr.mxu0 0.0
    %148 = vmatpush1.msra.mxu0 %v113
    %149 = vmatprep.subr.mxu0 0.0
    %150 = vmatpush1.msra.mxu0 %v112
    %151 = vmatprep.subr.mxu0 0.0
    %152 = vmatpush1.msra.mxu0 %v111
    %153 = vmatprep.subr.mxu0 0.0
    %154 = vmatpush1.msra.mxu0 %v110
    %155 = vmatprep.subr.mxu0 0.0
    %156 = vmatpush1.msra.mxu0 %v109
    %157 = vmatprep.subr.mxu0 0.0
    %158 = vmatpush1.msra.mxu0 %v108
    %159 = vmatprep.subr.mxu0 0.0
    %160 = vmatpush2.msra.mxu0 0.0
    %161 = vmatprep.subr.mxu0 0.0
    %162 = vmatpush2.msra.mxu0 0.0
    %163 = vmatprep.subr.mxu0 0.0
    %164 = vmatpush2.msra.mxu0 0.0
    %165 = vmatprep.subr.mxu0 0.0
    %166 = vmatpush2.msra.mxu0 0.0
    %167 = vmatprep.subr.mxu0 0.0
    %168 = vmatpush2.msra.mxu0 0.0
    %169 = vmatprep.subr.mxu0 0.0
    %170 = vmatpush2.msra.mxu0 0.0
    %171 = vmatprep.subr.mxu0 0.0
    %172 = vmatpush2.msra.mxu0 0.0
    %173 = vmatprep.subr.mxu0 0.0
    %174 = vmatpush2.msra.mxu0 0.0
    %175 = vmatprep.subr.mxu0 0.0
    %176 = vmatpush2.msra.mxu0 0.0
    %177 = vmatprep.subr.mxu0 0.0
    %178 = vmatpush2.msra.mxu0 0.0
    %179 = vmatprep.subr.mxu0 0.0
    %180 = vmatpush2.msra.mxu0 0.0
    %181 = vmatprep.subr.mxu0 0.0
    %182 = vmatpush2.msra.mxu0 0.0
    %183 = vmatprep.subr.mxu0 0.0
    %184 = vmatpush2.msra.mxu0 0.0
    %185 = vmatprep.subr.mxu0 0.0
    %186 = vmatpush2.msra.mxu0 0.0
    %187 = vmatprep.subr.mxu0 0.0
    %188 = vmatpush2.msra.mxu0 0.0
    %189 = vmatprep.subr.mxu0 0.0
    %190 = vmatpush2.msra.mxu0 0.0
    %191 = vmatprep.mubr.f32.mxu0 0.0
    %192 = vmatmul.mubr.f32.gmra.mxu0 %v125
    %v193 = vpop.f32.mrf.mxu0
    %v194 = vadd.f32 %v121, %v193
    %v195 = vpop.f32.mrf.mxu0
    %196 = vdwg.mxu0
    %v197 = vlaneseq
    %v198 = vand.u32 %v197, 127
    %vm199 = vcmp.lt.s32.totalorder %v198, 4
    %v200 = vsel %vm199, %v194, -inf
    %vm201 = vcmask 64512
    %v202 = vsel %vm201, %v200, -inf
    %203 = vmax.xlane.f32.xlu0 %v202
    %v204 = vpop.xlane.xlu0 %203
    %vm205 = vcmp.eq.f32.partialorder %v200, %v204
    %v206 = vsel %vm205, %v198, 8
    %v207 = vsel %vm201, %v206, 2147483647
    %v208 = vand.u32 %v207, 65535
    %v209 = vshra.s32 %v207, 16
    %v210 = vcvt.s32.f32 %v208
    %v211 = vcvt.s32.f32 %v209
    %212 = vmin.xlane.f32.xlu0 %v211
    %v213 = vpop.xlane.xlu0 %212
    %vm214 = vcmp.eq.f32.partialorder %v211, %v213
    %v215 = vsel %vm214, %v210, inf
    %216 = vmin.xlane.f32.xlu0 %v215
    %v217 = vpop.xlane.xlu0 %216
    %v218 = vcvt.f32.s32 %v217
    %v219 = vcvt.f32.s32 %v213
    %v220 = vshll.u32 %v219, 16
    %v221 = vadd.s32 %v220, %v218
    %v222 = vcvt.s32.f32 %v221
    %vm223 = vcmp.eq.s32.totalorder %v198, 4
    %v224 = vsel %vm223, %v222, %v194
    %225 = vst.msk [vmem:[#allocation2] sm:$0xff] %vm201, %v224
    // Predicated region
    $region22: #{tpu_custom_call.1} parent=1 // pred_check
      _
    $region23: #{tpu_custom_call.1} parent=1 // pred_check_branch
      %227 = sbr.rel (0) target = $region25
    $region24: #{tpu_custom_call.1} parent=1 // pred_region
      %s229 = ssub.s32 128, 128
      %230 = vsyncadd [#allocation3], %s229
      %s232 = sshll.u32 [#allocation2], 4
      %s233 = int_to_ptr.vmem [resolvable:$true] %s232
      %235 = dma.vmem_to_hbm [thread:$0]  %s233, 128, %s5, [#allocation3]
    $region25: #{tpu_custom_call.1} parent=1 // pred_fallthru
      _
    // Predicated region
    $region26: #{tpu_custom_call.1} parent=1 // pred_check
      _
    $region27: #{tpu_custom_call.1} parent=1 // pred_check_branch
      %237 = sbr.rel (0) target = $region29
    $region28: #{tpu_custom_call.1} parent=1 // pred_region
      %238 = dma.done [#allocation3], 128
    $region29: #{tpu_custom_call.1} parent=1 // pred_fallthru
      _
    %239 = vsyncpa [#allocation3], 1

</llo_original>
